<compile_context>
chip_gen: v5e
topology: v5e:2x2
jax: 0.10.0
libtpu: 0.0.40
codegen_flags: <defaults>
</compile_context>

<pallas_src>
import jax
import jax.numpy as jnp
from jax.experimental import pallas as pl
from jax.experimental.pallas import tpu as pltpu


def _conv_mm_bias_tanh_kernel(w_ref, b_ref, p_ref, o_ref):
    """Fused 3x3-conv-as-matmul + bias + tanh for one (batch, spatial) block.

    w_ref: (O, K)      folded conv weights, K = 9*C, index = tap*C + c
    b_ref: (O, 1)      bias (broadcast over the lane/spatial axis)
    p_ref: (1, K, TM)  im2col patches, spatial positions along lanes
    o_ref: (1, O, TM)  output block, spatial positions along lanes
    """
    acc = jnp.dot(w_ref[...], p_ref[0], preferred_element_type=jnp.float32)
    acc = acc + b_ref[...]                      # (O, 1) broadcasts over lanes
    o_ref[0] = jnp.tanh(acc).astype(o_ref.dtype)


def _pick_block_hw(hwp):
    """Largest spatial block in {512, 256, 128} that keeps >=2 grid steps."""
    for tm in (512, 256, 128):
        if hwp % tm == 0 and hwp // tm >= 2:
            return tm
    return hwp  # hwp == 128: single block


@jax.jit
def dimredconv_forward(x_nchw, weight, bias):
    """Forward pass of dimredconv (Conv2d 3x3 s1 p1 + Tanh).

    x_nchw : (N, C, H, W)  float32   (PyTorch layout)
    weight : (O, C, 3, 3)  float32   (PyTorch Conv2d layout)
    bias   : (O,)          float32
    returns: (N, O, H, W)  float32
    """
    N, C, H, W = x_nchw.shape
    O = weight.shape[0]
    K = 9 * C
    HW = H * W

    # ---- Glue in plain JAX: zero-pad + im2col, staying in NCHW (no transposes).
    x_pad = jnp.pad(x_nchw, ((0, 0), (0, 0), (1, 1), (1, 1)))  # (N, C, H+2, W+2)
    taps = []
    for ky in range(3):
        for kx in range(3):
            taps.append(x_pad[:, :, ky:ky + H, kx:kx + W].reshape(N, C, HW))
    patches = jnp.concatenate(taps, axis=1)            # (N, 9C, HW), idx = tap*C+c

    # Pad the spatial (lane) axis up to a multiple of 128 for aligned blocks.
    HWp = pl.cdiv(HW, 128) * 128
    if HWp != HW:
        patches = jnp.pad(patches, ((0, 0), (0, 0), (0, HWp - HW)))

    tm = _pick_block_hw(HWp)
    grid = (N, HWp // tm)

    # Fold PyTorch (O, C, 3, 3) weights to (O, 9C) with index tap*C + c.
    w2 = jnp.transpose(weight, (0, 2, 3, 1)).reshape(O, K).astype(jnp.float32)
    b2 = bias.reshape(O, 1).astype(jnp.float32)

    out = pl.pallas_call(
        _conv_mm_bias_tanh_kernel,
        out_shape=jax.ShapeDtypeStruct((N, O, HWp), jnp.float32),
        grid_spec=pltpu.PrefetchScalarGridSpec(
            num_scalar_prefetch=0,
            grid=grid,
            in_specs=[
                pl.BlockSpec((O, K), lambda n, j: (0, 0)),       # weights (resident)
                pl.BlockSpec((O, 1), lambda n, j: (0, 0)),       # bias    (resident)
                pl.BlockSpec((1, K, tm), lambda n, j: (n, 0, j)),  # patches block
            ],
            out_specs=pl.BlockSpec((1, O, tm), lambda n, j: (n, 0, j)),
        ),
        compiler_params=pltpu.CompilerParams(
            dimension_semantics=("parallel", "parallel"),
            vmem_limit_bytes=32 * 1024 * 1024,   # blocks are tiny; safe on v5e/v6e/v7x
        ),
    )(w2, b2, patches)

    # Drop spatial padding and split H*W back out (free, row-major reshape).
    return out[:, :, :HW].reshape(N, O, H, W)


if __name__ == "__main__":
    key = jax.random.PRNGKey(0)
    k_x, k_w, k_b = jax.random.split(key, 3)

    N, C_in, C_out, H, W = 2, 4, 8, 16, 16

    x = jax.random.normal(k_x, (N, C_in, H, W), dtype=jnp.float32)
    # Deterministic synthetic parameters (PyTorch Conv2d weight/bias shapes).
    fan_in = C_in * 3 * 3
    bound = 1.0 / (fan_in ** 0.5)
    weight = jax.random.uniform(
        k_w, (C_out, C_in, 3, 3), minval=-bound, maxval=bound, dtype=jnp.float32
    )
    bias = jax.random.uniform(
        k_b, (C_out,), minval=-bound, maxval=bound, dtype=jnp.float32
    )

    out = dimredconv_forward(x, weight, bias)
    out = jax.block_until_ready(out)

    # Reference check against XLA conv (same semantics as nn.Conv2d + Tanh).
    ref = jax.lax.conv_general_dilated(
        x, weight, window_strides=(1, 1), padding=((1, 1), (1, 1)),
        dimension_numbers=("NCHW", "OIHW", "NCHW"),
    ) + bias[None, :, None, None]
    ref = jnp.tanh(ref)
    assert out.shape == (N, C_out, H, W)
    assert jnp.allclose(out, ref, atol=1e-5, rtol=1e-5)

    print("KERNEL_OK")
</pallas_src>

<mosaic_0001>
module attributes {stable_mosaic.version = 11 : i64} {
  func.func @_conv_mm_bias_tanh_kernel(%arg0: i32, %arg1: i32, %arg2: memref<8x36xf32, #tpu.memory_space<vmem>>, %arg3: memref<8x1xf32, #tpu.memory_space<vmem>>, %arg4: memref<1x36x128xf32, #tpu.memory_space<vmem>>, %arg5: memref<1x8x128xf32, #tpu.memory_space<vmem>>) attributes {dimension_semantics = [#tpu.dimension_semantics<parallel>, #tpu.dimension_semantics<parallel>], iteration_bounds = array<i64: 2, 2>, scalar_prefetch = 0 : i64, scratch_operands = 0 : i64, tpu.core_type = #tpu.core_type<tc>, window_params = [{pipeline_mode = #tpu.pipeline_mode<synchronous>, transform_indices = @transform_0, window_bounds = array<i64: 8, 36>}, {pipeline_mode = #tpu.pipeline_mode<synchronous>, transform_indices = @transform_1, window_bounds = array<i64: 8, 1>}, {transform_indices = @transform_2, window_bounds = array<i64: 1, 36, 128>}, {transform_indices = @transform_3, window_bounds = array<i64: 1, 8, 128>}]} {
    %c0 = arith.constant 0 : index
    %c0_0 = arith.constant 0 : index
    %0 = vector.load %arg2[%c0, %c0_0] : memref<8x36xf32, #tpu.memory_space<vmem>>, vector<8x36xf32>
    %c0_1 = arith.constant 0 : index
    %c0_2 = arith.constant 0 : index
    %c0_3 = arith.constant 0 : index
    %1 = vector.load %arg4[%c0_1, %c0_2, %c0_3] : memref<1x36x128xf32, #tpu.memory_space<vmem>>, vector<1x36x128xf32>
    %2 = vector.shape_cast %1 : vector<1x36x128xf32> to vector<36x128xf32>
    %cst = arith.constant dense<0.000000e+00> : vector<8x128xf32>
    %3 = tpu.matmul %0, %2, %cst {dimension_numbers = #tpu.dot_dimension_numbers<[1], [0], [0], [1], [0, 0, 1, 1], [], []>} : vector<8x36xf32>, vector<36x128xf32>, vector<8x128xf32> -> vector<8x128xf32>
    %c0_4 = arith.constant 0 : index
    %c0_5 = arith.constant 0 : index
    %4 = vector.load %arg3[%c0_4, %c0_5] : memref<8x1xf32, #tpu.memory_space<vmem>>, vector<8x1xf32>
    %5 = vector.broadcast %4 : vector<8x1xf32> to vector<8x128xf32>
    %6 = arith.addf %3, %5 : vector<8x128xf32>
    %7 = math.tanh %6 : vector<8x128xf32>
    %c0_6 = arith.constant 0 : index
    %c0_7 = arith.constant 0 : index
    %c0_8 = arith.constant 0 : index
    %8 = vector.load %arg5[%c0_6, %c0_7, %c0_8] : memref<1x8x128xf32, #tpu.memory_space<vmem>>, vector<1x8x128xf32>
    %9 = vector.shape_cast %8 : vector<1x8x128xf32> to vector<8x128xf32>
    %10 = vector.shape_cast %7 : vector<8x128xf32> to vector<1x8x128xf32>
    tpu.vector_store %arg5[%c0_6, %c0_7, %c0_8], %10 {strides = array<i32>} : memref<1x8x128xf32, #tpu.memory_space<vmem>>, vector<1x8x128xf32>,
    return
  }
  func.func @transform_0(%arg0: i32, %arg1: i32) -> (i32, i32) {
    %c0_i32 = arith.constant 0 : i32
    %c0_i32_0 = arith.constant 0 : i32
    %c0_i32_1 = arith.constant 0 : i32
    return %c0_i32, %c0_i32_0 : i32, i32
  }
  func.func @transform_1(%arg0: i32, %arg1: i32) -> (i32, i32) {
    %c0_i32 = arith.constant 0 : i32
    %c0_i32_0 = arith.constant 0 : i32
    %c0_i32_1 = arith.constant 0 : i32
    return %c0_i32, %c0_i32_0 : i32, i32
  }
  func.func @transform_2(%arg0: i32, %arg1: i32) -> (i32, i32, i32) {
    %c0_i32 = arith.constant 0 : i32
    %c0_i32_0 = arith.constant 0 : i32
    return %arg0, %c0_i32, %arg1 : i32, i32, i32
  }
  func.func @transform_3(%arg0: i32, %arg1: i32) -> (i32, i32, i32) {
    %c0_i32 = arith.constant 0 : i32
    %c0_i32_0 = arith.constant 0 : i32
    return %arg0, %c0_i32, %arg1 : i32, i32, i32
  }
}

</mosaic_0001>

<llo_original>
// kernel: dimredconv_forward.1
$region0: #{dimredconv_forward.1}
  #allocation0 [shape = 'u32[]', space=smem, size = 0x4, offset = 0x4, fixed_abs, tag = 'smem constant byte address 0x4 - core index']
  #allocation1 [shape = 'u32[72,128]{1,0:T(1,128)}', space=vmem, size = 0x9000, scoped, tag = 'internal scratch']
  %s0 = inlined_call_operand.vmem [shape: f32[8,36], index: 0, kind: input, shape index: {}]
  %s1 = inlined_call_operand.vmem [shape: f32[8,1], index: 1, kind: input, shape index: {}]
  %s2 = inlined_call_operand.vmem [shape: f32[2,36,256], index: 2, kind: input, shape index: {}]
  %s3 = inlined_call_operand.vmem [shape: f32[2,8,256], index: 3, kind: output, shape index: {}]
  %s4 = sld [smem:[#allocation0]]
  $region83: #{dimredconv_forward.1} parent=0
    _
  %s6 = ssub.s32 1, %s4
  %s7 = scalar_select 0, %s6, %s4
  $region1: #{dimredconv_forward.1} parent=0
    #allocation2 [shape = 'u8[40960]{0}', space=vmem, size = 0xa000, scoped, tag = 'input window, operand 2']
    loop: start=0, step=1, limit=6
    $region2: #{dimredconv_forward.1} parent=1 // loop_pre_header
      _
    $region3: #{dimredconv_forward.1} parent=1 // loop_header
      %s9 = sphi 0, %s13
      %p10 = scmp.ge.s32.totalorder %s9, 6
      %s16 = sphi 0, %s28
      %s17 = sphi 0, %s24
      %s18 = sphi 0, %s16
      %s19 = sphi 0, %s17
      %s20 = sphi 0, %s18
      %s21 = sphi 0, %s19
      %s29 = sphi 0, %s29
      %s31 = sphi 0, %s29
      %s32 = sphi 0, %s31
      %s46 = sphi 0, %s32
      %s50 = sphi 0, %s50
      %s52 = sphi 0, %s50
      %s53 = sphi 0, %s52
      %s67 = sphi 0, %s53
      %s75 = sphi 0, %s77
      %s78 = sphi 0, %s75
      %s79 = sphi 0, %s78
      %s95 = sphi 0, %s79
      %s103 = sphi 0, %s105
      %s106 = sphi 0, %s103
      %s107 = sphi 0, %s106
      %s123 = sphi 0, %s107
    $region4: #{dimredconv_forward.1} parent=1 // loop_header_branch
      %12 = sbr.rel (%p10) target = $region8
    $region5: #{dimredconv_forward.1} parent=1 // loop_body
      %s14 = ssub.s32 %s9, 1
      %s15 = ssub.s32 %s9, 2
      %s22 = sadd.s32 1, %s17
      %p23 = scmp.ge.s32.totalorder %s22, 2
      %s24 = scalar_select %p23, 0, %s22
      %s25 = sadd.s32 1, %s16
      %s26 = scalar_select %p23, %s25, %s16
      %p27 = scmp.ge.s32.totalorder %s26, 2
      %s28 = scalar_select %p27, 0, %s26
      %s30 = sadd.s32 %s29, 1
      %p33 = scmp.eq.s32.totalorder %s9, 3
      %p34 = scmp.ne.s32.totalorder %s29, %s31
      %p35 = scmp.eq.s32.totalorder %s9, 0
      %p36 = por %p34, %p35
      %p37 = scmp.ne.s32.totalorder %s29, %s31
      %p38 = scmp.eq.s32.totalorder %s14, 3
      %p39 = por %p37, %p38
      %p40 = scmp.ne.s32.totalorder %s31, %s32
      %p41 = scmp.eq.s32.totalorder %s14, 0
      %p42 = por %p40, %p41
      %p43 = scmp.ne.s32.totalorder %s31, %s32
      %p44 = scmp.eq.s32.totalorder %s15, 3
      %p45 = por %p43, %p44
      %p47 = scmp.ne.s32.totalorder %s32, %s46
      %p48 = scmp.eq.s32.totalorder %s15, 0
      %p49 = por %p47, %p48
      %s51 = sadd.s32 %s50, 1
      %p54 = scmp.eq.s32.totalorder %s9, 3
      %p55 = scmp.ne.s32.totalorder %s50, %s52
      %p56 = scmp.eq.s32.totalorder %s9, 0
      %p57 = por %p55, %p56
      %p58 = scmp.ne.s32.totalorder %s50, %s52
      %p59 = scmp.eq.s32.totalorder %s14, 3
      %p60 = por %p58, %p59
      %p61 = scmp.ne.s32.totalorder %s52, %s53
      %p62 = scmp.eq.s32.totalorder %s14, 0
      %p63 = por %p61, %p62
      %p64 = scmp.ne.s32.totalorder %s52, %s53
      %p65 = scmp.eq.s32.totalorder %s15, 3
      %p66 = por %p64, %p65
      %p68 = scmp.ne.s32.totalorder %s53, %s67
      %p69 = scmp.eq.s32.totalorder %s15, 0
      %p70 = por %p68, %p69
      %s71 = ssub.s32 %s16, %s28
      %s72 = ssub.s32 %s17, %s24
      %s73 = sor.u32 %s71, %s72
      %p74 = scmp.eq.s32.totalorder %s73, 0
      %s76 = sadd.s32 %s75, 1
      %s77 = scalar_select %p74, %s75, %s76
      %p80 = pneg %p74
      %p81 = scmp.eq.s32.totalorder %s9, 3
      %p82 = por %p80, %p81
      %p83 = scmp.ne.s32.totalorder %s75, %s78
      %p84 = scmp.eq.s32.totalorder %s9, 0
      %p85 = por %p83, %p84
      %p86 = scmp.ne.s32.totalorder %s75, %s78
      %p87 = scmp.eq.s32.totalorder %s14, 3
      %p88 = por %p86, %p87
      %p89 = scmp.ne.s32.totalorder %s78, %s79
      %p90 = scmp.eq.s32.totalorder %s14, 0
      %p91 = por %p89, %p90
      %p92 = scmp.ne.s32.totalorder %s78, %s79
      %p93 = scmp.eq.s32.totalorder %s15, 3
      %p94 = por %p92, %p93
      %p96 = scmp.ne.s32.totalorder %s79, %s95
      %p97 = scmp.eq.s32.totalorder %s15, 0
      %p98 = por %p96, %p97
      %s99 = ssub.s32 %s16, %s28
      %s100 = ssub.s32 %s17, %s24
      %s101 = sor.u32 %s99, %s100
      %p102 = scmp.eq.s32.totalorder %s101, 0
      %s104 = sadd.s32 %s103, 1
      %s105 = scalar_select %p102, %s103, %s104
      %p108 = pneg %p102
      %p109 = scmp.eq.s32.totalorder %s9, 3
      %p110 = por %p108, %p109
      %p111 = scmp.ne.s32.totalorder %s103, %s106
      %p112 = scmp.eq.s32.totalorder %s9, 0
      %p113 = por %p111, %p112
      %p114 = scmp.ne.s32.totalorder %s103, %s106
      %p115 = scmp.eq.s32.totalorder %s14, 3
      %p116 = por %p114, %p115
      %p117 = scmp.ne.s32.totalorder %s106, %s107
      %p118 = scmp.eq.s32.totalorder %s14, 0
      %p119 = por %p117, %p118
      %p120 = scmp.ne.s32.totalorder %s106, %s107
      %p121 = scmp.eq.s32.totalorder %s15, 3
      %p122 = por %p120, %p121
      %p124 = scmp.ne.s32.totalorder %s107, %s123
      %p125 = scmp.eq.s32.totalorder %s15, 0
      %p126 = por %p124, %p125
      %p127 = scmp.le.s32.totalorder 1, %s9
      %p128 = scmp.lt.s32.totalorder %s9, 5
      %p129 = pnand %p127, %p128
      %p130 = pneg %p129
      // Predicated region
      $region9: #{dimredconv_forward.1} parent=5 // pred_check
        _
      $region10: #{dimredconv_forward.1} parent=5 // pred_check_branch
        %132 = sbr.rel (%p129) target = $region12
      $region11: #{dimredconv_forward.1} parent=5 // pred_region
        %s133 = ssub.s32 %s9, 1
        // Predicated region
        $region13: #{dimredconv_forward.1} parent=11 // pred_check
          %p134 = pneg %p42
        $region14: #{dimredconv_forward.1} parent=11 // pred_check_branch
          %136 = sbr.rel (%p134) target = $region16
        $region15: #{dimredconv_forward.1} parent=11 // pred_region
          _
        $region16: #{dimredconv_forward.1} parent=11 // pred_fallthru
          _
        // Predicated region
        $region17: #{dimredconv_forward.1} parent=11 // pred_check
          %p137 = pneg %p63
        $region18: #{dimredconv_forward.1} parent=11 // pred_check_branch
          %139 = sbr.rel (%p137) target = $region20
        $region19: #{dimredconv_forward.1} parent=11 // pred_region
          _
        $region20: #{dimredconv_forward.1} parent=11 // pred_fallthru
          _
      $region12: #{dimredconv_forward.1} parent=5 // pred_fallthru
        _
      %p140 = scmp.lt.s32.totalorder %s9, 4
      // Predicated region
      $region21: #{dimredconv_forward.1} parent=5 // pred_check
        %p141 = pneg %p140
      $region22: #{dimredconv_forward.1} parent=5 // pred_check_branch
        %143 = sbr.rel (%p141) target = $region24
      $region23: #{dimredconv_forward.1} parent=5 // pred_region
        // Predicated region
        $region25: #{dimredconv_forward.1} parent=23 // pred_check
          %p144 = pneg %p85
        $region26: #{dimredconv_forward.1} parent=23 // pred_check_branch
          %146 = sbr.rel (%p144) target = $region28
        $region27: #{dimredconv_forward.1} parent=23 // pred_region
          %s147 = sand.u32 %s75, 1
          %s148 = sand.u32 %s75, 1
          %s149 = smul.addr %s148, 40
          %s150 = scalar_lea.vmem [#allocation2], %s149
          %s151 = smul.addr %s16, 10
          %s152 = sadd.s32 %s17, %s151
          %s153 = smul.addr %s152, 8
          %s154 = scalar_lea.vmem %s2, %s153
          // Predicated region
          $region29: #{dimredconv_forward.1} parent=27 // pred_check
            _
          $region30: #{dimredconv_forward.1} parent=27 // pred_check_branch
            %156 = sbr.rel (0) target = $region32
          $region31: #{dimredconv_forward.1} parent=27 // pred_region
            // Predicated region
            $region33: #{dimredconv_forward.1} parent=31 // pred_check
              _
            $region34: #{dimredconv_forward.1} parent=31 // pred_check_branch
              %158 = sbr.rel (0) target = $region36
            $region35: #{dimredconv_forward.1} parent=31 // pred_region
              // Predicated region
              $region48: #{dimredconv_forward.1} parent=35 // pred_check
                _
              $region49: #{dimredconv_forward.1} parent=35 // pred_check_branch
                %182 = sbr.rel (0) target = $region51
              $region50: #{dimredconv_forward.1} parent=35 // pred_region
                loop: start=0, step=1, limit=1
                $region52: #{dimredconv_forward.1} parent=50 // loop_pre_header
                  _
                $region53: #{dimredconv_forward.1} parent=50 // loop_header
                  %s184 = sphi 0, %s188
                  %p185 = scmp.ge.s32.totalorder %s184, 1
                  %s189 = sphi %s154, %s154
                  %s190 = sphi %s150, %s150
                $region54: #{dimredconv_forward.1} parent=50 // loop_header_branch
                  %187 = sbr.rel (%p185) target = $region58
                $region55: #{dimredconv_forward.1} parent=50 // loop_body
                  %v191 = vld [vmem:[%s189] sm:$0xff]
                  %192 = vst [vmem:[%s190] sm:$0xff] %v191
                  %v193 = vld [vmem:[%s189 + $0x10] sm:$0xff]
                  %194 = vst [vmem:[%s190 + $0x8] sm:$0xff] %v193
                  %v195 = vld [vmem:[%s189 + $0x20] sm:$0xff]
                  %196 = vst [vmem:[%s190 + $0x10] sm:$0xff] %v195
                  %v197 = vld [vmem:[%s189 + $0x30] sm:$0xff]
                  %198 = vst [vmem:[%s190 + $0x18] sm:$0xff] %v197
                  %v199 = vld [vmem:[%s189 + $0x40] sm:$0xff]
                  %200 = vst [vmem:[%s190 + $0x20] sm:$0xff] %v199
                $region56: #{dimredconv_forward.1} parent=50 // loop_footer
                  %s188 = sadd.s32 1, %s184
                $region57: #{dimredconv_forward.1} parent=50 // loop_footer_branch
                  %183 = sbr.rel target = $region53
                $region58: #{dimredconv_forward.1} parent=50 // loop_exit
                  _
              $region51: #{dimredconv_forward.1} parent=35 // pred_fallthru
                _
              // Predicated region
              $region59: #{dimredconv_forward.1} parent=35 // pred_check
                _
              $region60: #{dimredconv_forward.1} parent=35 // pred_check_branch
                %202 = sbr.rel target = $region62
              $region61: #{dimredconv_forward.1} parent=35 // pred_region
                _
              $region62: #{dimredconv_forward.1} parent=35 // pred_fallthru
                _
            $region36: #{dimredconv_forward.1} parent=31 // pred_fallthru
              _
            // Predicated region
            $region37: #{dimredconv_forward.1} parent=31 // pred_check
              _
            $region38: #{dimredconv_forward.1} parent=31 // pred_check_branch
              %160 = sbr.rel target = $region40
            $region39: #{dimredconv_forward.1} parent=31 // pred_region
              %s162 = ssub.s32 256, 1
              loop: start=0, step=1, limit=1
              $region41: #{dimredconv_forward.1} parent=39 // loop_pre_header
                _
              $region42: #{dimredconv_forward.1} parent=39 // loop_header
                %s164 = sphi 0, %s168
                %p165 = scmp.ge.s32.totalorder %s164, 1
                %s169 = sphi %s154, %s154
                %s170 = sphi %s150, %s150
              $region43: #{dimredconv_forward.1} parent=39 // loop_header_branch
                %167 = sbr.rel (%p165) target = $region47
              $region44: #{dimredconv_forward.1} parent=39 // loop_body
                %v171 = vld [vmem:[%s169] sm:%s162]
                %172 = vst [vmem:[%s170] sm:%s162] %v171
                %v173 = vld [vmem:[%s169 + $0x10] sm:%s162]
                %174 = vst [vmem:[%s170 + $0x8] sm:%s162] %v173
                %v175 = vld [vmem:[%s169 + $0x20] sm:%s162]
                %176 = vst [vmem:[%s170 + $0x10] sm:%s162] %v175
                %v177 = vld [vmem:[%s169 + $0x30] sm:%s162]
                %178 = vst [vmem:[%s170 + $0x18] sm:%s162] %v177
                %v179 = vld [vmem:[%s169 + $0x40] sm:%s162]
                %180 = vst [vmem:[%s170 + $0x20] sm:%s162] %v179
              $region45: #{dimredconv_forward.1} parent=39 // loop_footer
                %s168 = sadd.s32 1, %s164
              $region46: #{dimredconv_forward.1} parent=39 // loop_footer_branch
                %163 = sbr.rel target = $region42
              $region47: #{dimredconv_forward.1} parent=39 // loop_exit
                _
            $region40: #{dimredconv_forward.1} parent=31 // pred_fallthru
              _
          $region32: #{dimredconv_forward.1} parent=27 // pred_fallthru
            _
          %203 = vnop
        $region28: #{dimredconv_forward.1} parent=23 // pred_fallthru
          _
      $region24: #{dimredconv_forward.1} parent=5 // pred_fallthru
        _
      %p204 = scmp.le.s32.totalorder 1, %s9
      %p205 = scmp.lt.s32.totalorder %s9, 5
      %p206 = pnand %p204, %p205
      %p207 = pneg %p206
      // Predicated region
      $region63: #{dimredconv_forward.1} parent=5 // pred_check
        _
      $region64: #{dimredconv_forward.1} parent=5 // pred_check_branch
        %209 = sbr.rel (%p206) target = $region66
      $region65: #{dimredconv_forward.1} parent=5 // pred_region
        %s210 = ssub.s32 %s9, 1
        %s211 = sand.u32 %s78, 1
        %s212 = sand.u32 %s78, 1
        %s213 = smul.addr %s212, 40
        %s214 = scalar_lea.vmem [#allocation2], %s213
        // Predicated region
        $region67: #{dimredconv_forward.1} parent=65 // pred_check
          %p215 = pneg %p91
        $region68: #{dimredconv_forward.1} parent=65 // pred_check_branch
          %217 = sbr.rel (%p215) target = $region70
        $region69: #{dimredconv_forward.1} parent=65 // pred_region
          _
        $region70: #{dimredconv_forward.1} parent=65 // pred_fallthru
          _
        %p218 = pneg %p42
        %p219 = pneg %p39
        %p220 = pneg %p63
        %p221 = pneg %p60
        %s222 = sand.u32 %s78, 1
        %s223 = sand.u32 %s78, 1
        %s224 = smul.addr %s223, 40
        %s225 = scalar_lea.vmem [#allocation2], %s224
        %p226 = pneg %p91
        %p227 = pneg %p88
        %p228 = pneg %p119
        %p229 = pneg %p116
        %p230 = scmp.lt.s32.totalorder %s18, 1
        %s231 = scalar_select %p230, %s18, 1
        %p232 = scmp.lt.s32.totalorder %s19, 1
        %s233 = scalar_select %p232, %s19, 1
        %s234 = smul.addr %s231, 2
        %s235 = sadd.s32 %s233, %s234
        %s236 = smul.addr %s235, 8
        %s237 = scalar_lea.vmem %s3, %s236
        %p238 = scmp.lt.s32.totalorder %s18, 1
        %s239 = scalar_select %p238, %s18, 1
        %p240 = scmp.lt.s32.totalorder %s19, 1
        %s241 = scalar_select %p240, %s19, 1
        %s242 = smul.addr %s239, 2
        %s243 = sadd.s32 %s241, %s242
        %s244 = smul.addr %s243, 8
        %s245 = scalar_lea.vmem %s3, %s244
        %v246 = vld [vmem:[%s0] sm:$0xff]
        %v247 = vld [vmem:[%s214] sm:$0xff]
        %v248 = vld [vmem:[%s214 + $0x8] sm:$0xff]
        %v249 = vld [vmem:[%s214 + $0x10] sm:$0xff]
        %v250 = vld [vmem:[%s214 + $0x18] sm:$0xff]
        %v251 = vld [vmem:[%s214 + $0x20] sm:$0xf]
        %v252 = vld [vmem:[%s1] sm:$0xff]
        %254 = vset.pattern.permute.xlu0 0
        %255 = vperm.xlu0 %254, %v252
        %v256 = vpop.permute.xlu0 %255
        %vm258 = vcmask 293888
        %v260 = vsel %vm258, %v246, 0
        %vm262 = vcmask 1043456
        %v264 = vsel %vm262, %v251, 0
        %266 = vmatpush.msra.mxu0 0.0
        %267 = vmatpush.msra.mxu0 0.0
        %268 = vmatpush.msra.mxu0 0.0
        %269 = vmatpush.msra.mxu0 0.0
        %270 = vmatpush.msra.mxu0 0.0
        %271 = vmatpush.msra.mxu0 0.0
        %272 = vmatpush.msra.mxu0 0.0
        %273 = vmatpush.msra.mxu0 0.0
        %274 = vmatpush.msra.mxu0 0.0
        %275 = vmatpush.msra.mxu0 0.0
        %276 = vmatpush.msra.mxu0 0.0
        %277 = vmatpush.msra.mxu0 %v264
        %278 = vmatpush.msra.mxu0 %v250
        %279 = vmatpush.msra.mxu0 %v249
        %280 = vmatpush.msra.mxu0 %v248
        %281 = vmatpush.msra.mxu0 %v247
        %282 = vmatmul.f32.gmra.mxu0 %v260
        %v283 = vpop.f32.mrf.mxu0
        %v284 = vadd.f32 %v256, %v283
        %285 = vdwg.mxu0
        %v286 = vtanh.pop %v284
        %287 = vst [vmem:[%s245] sm:$0xff] %v286
        %p288 = scmp.lt.s32.totalorder %s18, 1
        %s289 = scalar_select %p288, %s18, 1
        %p290 = scmp.lt.s32.totalorder %s19, 1
        %s291 = scalar_select %p290, %s19, 1
        %s292 = smul.addr %s289, 2
        %s293 = sadd.s32 %s291, %s292
        %s294 = smul.addr %s293, 8
        %s295 = scalar_lea.vmem %s3, %s294
        // Predicated region
        $region71: #{dimredconv_forward.1} parent=65 // pred_check
          %p296 = pneg %p116
        $region72: #{dimredconv_forward.1} parent=65 // pred_check_branch
          %298 = sbr.rel (%p296) target = $region74
        $region73: #{dimredconv_forward.1} parent=65 // pred_region
          _
        $region74: #{dimredconv_forward.1} parent=65 // pred_fallthru
          _
      $region66: #{dimredconv_forward.1} parent=5 // pred_fallthru
        _
      %p299 = scmp.le.s32.totalorder 2, %s9
      // Predicated region
      $region75: #{dimredconv_forward.1} parent=5 // pred_check
        %p300 = pneg %p299
      $region76: #{dimredconv_forward.1} parent=5 // pred_check_branch
        %302 = sbr.rel (%p300) target = $region78
      $region77: #{dimredconv_forward.1} parent=5 // pred_region
        %s303 = ssub.s32 %s9, 2
        // Predicated region
        $region79: #{dimredconv_forward.1} parent=77 // pred_check
          %p304 = pneg %p122
        $region80: #{dimredconv_forward.1} parent=77 // pred_check_branch
          %306 = sbr.rel (%p304) target = $region82
        $region81: #{dimredconv_forward.1} parent=77 // pred_region
          %p307 = scmp.lt.s32.totalorder %s20, 1
          %s308 = scalar_select %p307, %s20, 1
          %p309 = scmp.lt.s32.totalorder %s21, 1
          %s310 = scalar_select %p309, %s21, 1
          %s311 = smul.addr %s308, 2
          %s312 = sadd.s32 %s310, %s311
          %s313 = smul.addr %s312, 8
          %s314 = scalar_lea.vmem %s3, %s313
        $region82: #{dimredconv_forward.1} parent=77 // pred_fallthru
          _
      $region78: #{dimredconv_forward.1} parent=5 // pred_fallthru
        _
    $region6: #{dimredconv_forward.1} parent=1 // loop_footer
      %s13 = sadd.s32 1, %s9
    $region7: #{dimredconv_forward.1} parent=1 // loop_footer_branch
      %8 = sbr.rel target = $region3
    $region8: #{dimredconv_forward.1} parent=1 // loop_exit
      _

</llo_original>
